<compile_context>
chip_gen: v5e
topology: v5e:2x2
jax: 0.10.0
libtpu: 0.0.40
codegen_flags: <defaults>
</compile_context>

<pallas_src>
import functools

import jax
import jax.numpy as jnp
from jax.experimental import pallas as pl
from jax.experimental.pallas import tpu as pltpu

LANE = 128
CHUNK_ROWS = 512     # 512*128*4B = 256 KiB per f32 temporary chunk


def _chip_config():
    """(tile_rows_max, num_slices, vmem_limit_bytes) per TPU generation."""
    kind = ""
    try:
        kind = jax.devices()[0].device_kind.lower()
    except Exception:  # pragma: no cover - CPU/interpret fallbacks
        pass
    if "v7" in kind or "7x" in kind:
        # 2 TensorCores, 64 MiB VMEM/TC, 3.2 TB/s HBM -> big blocks, 2 slices.
        # TODO(synk): if an xprof trace shows the leading axis is not sharded
        # across both TCs, switch dimension_semantics[0] to pltpu.CORE_PARALLEL.
        return 8192, 2, 48 * 1024 * 1024
    if "v6" in kind:
        # 1 TC, 128 MiB physical VMEM -> big blocks, single slice.
        return 8192, 1, 48 * 1024 * 1024
    # v5e / unknown: stay within the 16 MiB default scoped-VMEM budget.
    return 4096, 1, None


def _charbonnier_kernel(x_ref, y_ref, out_ref, acc_ref, *,
                        eps2, tile_rows, chunk_rows, num_blocks,
                        steps_per_slice, last_block_rows):
    c = pl.program_id(0)   # slice / core index ("parallel")
    i = pl.program_id(1)   # reduction step within slice ("arbitrary")

    # Unconditional accumulator reset at the start of every slice's sweep.
    @pl.when(i == 0)
    def _():
        acc_ref[...] = jnp.zeros_like(acc_ref)

    global_block = c * steps_per_slice + i

    def one_chunk(row0, cr):
        xd = x_ref[pl.ds(row0, cr), :].astype(jnp.float32)
        yd = y_ref[pl.ds(row0, cr), :].astype(jnp.float32)
        d = xd - yd
        t = jnp.sqrt(d * d + jnp.float32(eps2))
        # Fold down to one (8, 128) vreg of lane-parallel partial sums.
        acc_ref[...] += t.reshape(cr // 8, 8, LANE).sum(axis=0)

    def accumulate(nrows):
        # nrows is static (multiple of 8).  Chunked so f32 temporaries stay
        # ~chunk_rows*128*4 bytes regardless of the DMA block size.
        n_full, rem = divmod(nrows, chunk_rows)
        if n_full > 0:
            def body(k, carry):
                row0 = pl.multiple_of(k * chunk_rows, 8)
                one_chunk(row0, chunk_rows)
                return carry
            jax.lax.fori_loop(0, n_full, body, 0, unroll=True)
        if rem:
            one_chunk(n_full * chunk_rows, rem)

    if last_block_rows > 0:
        # Last block of the array is partial (static row count, still a
        # multiple of 8*pack): gate the two static code paths on block id.
        last = num_blocks - 1

        @pl.when(global_block < last)
        def _():
            accumulate(tile_rows)

        @pl.when(global_block == last)
        def _():
            accumulate(last_block_rows)
    else:
        # Every in-range block is full; clamped duplicates are skipped.
        @pl.when(global_block < num_blocks)
        def _():
            accumulate(tile_rows)

    # Single cross-lane reduce + SMEM store, once per slice.
    @pl.when(i == pl.num_programs(1) - 1)
    def _():
        out_ref[0, 0] = jnp.sum(acc_ref[...])


def charbonnier_loss(x, y, eps=1e-6, out_norm="bci",
                     _tile_rows_max=None, _num_slices=None):
    """Pallas implementation of CharbonnierLoss.forward(x, y)."""
    img_shape = x.shape

    # --- normalization factor (plain Python, mirrors get_outnorm) ---
    norm = 1.0
    if out_norm:
        if "b" in out_norm:
            norm /= img_shape[0]
        if "c" in out_norm:
            norm /= img_shape[-3]
        if "i" in out_norm:
            norm /= img_shape[-1] * img_shape[-2]

    eps2 = float(eps) ** 2
    total = x.size

    itemsize = jnp.dtype(x.dtype).itemsize
    pack = max(1, 4 // itemsize)          # sublane packing for sub-32-bit dtypes
    align = 8 * pack * LANE               # elements per native (8*pack, 128) tile

    tile_rows_max, num_slices, vmem_limit = _chip_config()
    if _tile_rows_max is not None:
        tile_rows_max = _tile_rows_max
    if _num_slices is not None:
        num_slices = _num_slices

    xf = jnp.ravel(x)
    yf = jnp.ravel(y)

    main = total - (total % align)        # largest aligned prefix (static)

    # Ragged tail (< align elements): tiny plain-jnp reduction instead of a
    # full-tensor pad/concat copy of x and y.
    tail_sum = jnp.float32(0.0)
    if main < total:
        # TODO(synk): the prefix slice below (when main > 0) still costs one
        # HBM copy of x/y for ragged shapes; a memory_space=pl.ANY manual-DMA
        # kernel over the flat arrays would make it fully copy-free.
        dt = xf[main:].astype(jnp.float32) - yf[main:].astype(jnp.float32)
        tail_sum = jnp.sum(jnp.sqrt(dt * dt + jnp.float32(eps2)))

    if main == 0:
        return (tail_sum * jnp.float32(norm)).astype(jnp.float32)

    rows = main // LANE                   # multiple of 8*pack
    x2 = (xf if main == total else xf[:main]).reshape(rows, LANE)
    y2 = (yf if main == total else yf[:main]).reshape(rows, LANE)

    tile_rows = min(rows, tile_rows_max)          # multiple of 8*pack
    chunk_rows = min(CHUNK_ROWS, tile_rows)       # multiple of 8
    num_blocks = pl.cdiv(rows, tile_rows)
    last_block_rows = rows % tile_rows            # 0 => last block is full
    num_slices = max(1, min(num_slices, num_blocks))
    steps = pl.cdiv(num_blocks, num_slices)

    if num_slices == 1:
        def in_map(c, i):
            return (i, 0)
    else:
        def in_map(c, i):
            # Clamp: the last slice may have one extra step; the kernel skips
            # compute for the clamped duplicate block.
            return (jnp.minimum(c * steps + i, num_blocks - 1), 0)

    kernel = functools.partial(
        _charbonnier_kernel,
        eps2=eps2,
        tile_rows=tile_rows,
        chunk_rows=chunk_rows,
        num_blocks=num_blocks,
        steps_per_slice=steps,
        last_block_rows=last_block_rows,
    )

    cp_kwargs = dict(dimension_semantics=("parallel", "arbitrary"))
    if vmem_limit is not None:
        cp_kwargs["vmem_limit_bytes"] = int(vmem_limit)

    partials = pl.pallas_call(
        kernel,
        out_shape=jax.ShapeDtypeStruct((num_slices, 1), jnp.float32),
        grid_spec=pltpu.PrefetchScalarGridSpec(
            num_scalar_prefetch=0,
            grid=(num_slices, steps),
            in_specs=[
                pl.BlockSpec((tile_rows, LANE), in_map),
                pl.BlockSpec((tile_rows, LANE), in_map),
            ],
            out_specs=pl.BlockSpec(
                (1, 1), lambda c, i: (c, 0), memory_space=pltpu.SMEM
            ),
            scratch_shapes=[pltpu.VMEM((8, LANE), jnp.float32)],
        ),
        compiler_params=pltpu.CompilerParams(**cp_kwargs),
        cost_estimate=pl.CostEstimate(
            flops=4 * main,
            transcendentals=main,
            bytes_accessed=2 * main * itemsize + 4 * num_slices,
        ),
    )(x2, y2)

    return (jnp.sum(partials) + tail_sum) * jnp.float32(norm)


def _ref_loss(x, y, eps, norm_shape):
    b, c, h, w = norm_shape
    d = x.astype(jnp.float32) - y.astype(jnp.float32)
    return jnp.sum(jnp.sqrt(d * d + jnp.float32(eps) ** 2)) / (b * c * h * w)


if __name__ == "__main__":
    key = jax.random.PRNGKey(0)
    kx, ky = jax.random.split(key)

    # NCHW, matches PyTorch convention. Aligned case: free reshape, no copies.
    B, C, H, W = 2, 4, 16, 16
    x = jax.random.normal(kx, (B, C, H, W), dtype=jnp.float32)
    y = jax.random.normal(ky, (B, C, H, W), dtype=jnp.float32)
    loss = jax.block_until_ready(charbonnier_loss(x, y, eps=1e-6, out_norm="bci"))
    ref = _ref_loss(x, y, 1e-6, (B, C, H, W))
    assert jnp.allclose(loss, ref, rtol=1e-4, atol=1e-5), (loss, ref)

    # Ragged shape: exercises aligned-prefix kernel + jnp tail path.
    xr = jax.random.normal(kx, (2, 3, 17, 19), dtype=jnp.float32)
    yr = jax.random.normal(ky, (2, 3, 17, 19), dtype=jnp.float32)
    loss_r = jax.block_until_ready(charbonnier_loss(xr, yr))
    ref_r = _ref_loss(xr, yr, 1e-6, (2, 3, 17, 19))
    assert jnp.allclose(loss_r, ref_r, rtol=1e-4, atol=1e-5), (loss_r, ref_r)

    # Multi-block + partial last block + 2-slice clamp/duplicate-skip path
    # (small tile override so the paths trigger at small test shapes).
    xm = jax.random.normal(kx, (2, 4, 64, 64), dtype=jnp.float32)
    ym = jax.random.normal(ky, (2, 4, 64, 64), dtype=jnp.float32)
    loss_m = jax.block_until_ready(
        charbonnier_loss(xm, ym, _tile_rows_max=56, _num_slices=2))
    ref_m = _ref_loss(xm, ym, 1e-6, (2, 4, 64, 64))
    assert jnp.allclose(loss_m, ref_m, rtol=1e-4, atol=1e-5), (loss_m, ref_m)

    print("KERNEL_OK")
</pallas_src>

<mosaic_0001>
module attributes {stable_mosaic.version = 11 : i64} {
  func.func @_charbonnier_kernel(%arg0: i32, %arg1: i32, %arg2: memref<16x128xf32, #tpu.memory_space<vmem>>, %arg3: memref<16x128xf32, #tpu.memory_space<vmem>>, %arg4: memref<1x1xf32, #tpu.memory_space<smem>>, %arg5: memref<8x128xf32, #tpu.memory_space<vmem>>) attributes {dimension_semantics = [#tpu.dimension_semantics<parallel>, #tpu.dimension_semantics<arbitrary>], iteration_bounds = array<i64: 1, 1>, scalar_prefetch = 0 : i64, scratch_operands = 1 : i64, tpu.core_type = #tpu.core_type<tc>, window_params = [{transform_indices = @transform_0, window_bounds = array<i64: 16, 128>}, {transform_indices = @transform_1, window_bounds = array<i64: 16, 128>}, {transform_indices = @transform_2, window_bounds = array<i64: 1, 1>}]} {
    %c0_i32 = arith.constant 0 : i32
    %0 = arith.cmpi eq, %arg1, %c0_i32 : i32
    %1 = arith.extui %0 : i1 to i32
    %c0_i32_0 = arith.constant 0 : i32
    %2 = arith.cmpi ne, %1, %c0_i32_0 : i32
    scf.if %2 {
      %cst = arith.constant 0.000000e+00 : f32
      %11 = vector.broadcast %cst : f32 to vector<8x128xf32>
      %c0 = arith.constant 0 : index
      %c0_5 = arith.constant 0 : index
      %12 = vector.load %arg5[%c0, %c0_5] : memref<8x128xf32, #tpu.memory_space<vmem>>, vector<8x128xf32>
      tpu.vector_store %arg5[%c0, %c0_5], %11 {strides = array<i32>} : memref<8x128xf32, #tpu.memory_space<vmem>>, vector<8x128xf32>,
    } else {
    }
    %c1_i32 = arith.constant 1 : i32
    %3 = arith.muli %arg0, %c1_i32 : i32
    %4 = arith.addi %3, %arg1 : i32
    %c1_i32_1 = arith.constant 1 : i32
    %5 = arith.cmpi slt, %4, %c1_i32_1 : i32
    %6 = arith.extui %5 : i1 to i32
    %c0_i32_2 = arith.constant 0 : i32
    %7 = arith.cmpi ne, %6, %c0_i32_2 : i32
    scf.if %7 {
      %c0_i32_5 = arith.constant 0 : i32
      %c16_i32 = arith.constant 16 : i32
      %11 = arith.muli %c0_i32_5, %c16_i32 : i32
      %12 = tpu.assume_multiple %11, 8 : i32
      %13 = arith.index_cast %12 : i32 to index
      %c0 = arith.constant 0 : index
      %14 = vector.load %arg2[%13, %c0] : memref<16x128xf32, #tpu.memory_space<vmem>>, vector<16x128xf32>
      %15 = arith.index_cast %12 : i32 to index
      %c0_6 = arith.constant 0 : index
      %16 = vector.load %arg3[%15, %c0_6] : memref<16x128xf32, #tpu.memory_space<vmem>>, vector<16x128xf32>
      %17 = arith.subf %14, %16 : vector<16x128xf32>
      %18 = arith.mulf %17, %17 : vector<16x128xf32>
      %cst = arith.constant 9.99999996E-13 : f32
      %19 = vector.broadcast %cst : f32 to vector<16x128xf32>
      %20 = arith.addf %18, %19 : vector<16x128xf32>
      %21 = math.sqrt %20 : vector<16x128xf32>
      %c0_7 = arith.constant 0 : index
      %c0_8 = arith.constant 0 : index
      %22 = vector.load %arg5[%c0_7, %c0_8] : memref<8x128xf32, #tpu.memory_space<vmem>>, vector<8x128xf32>
      %23 = vector.shape_cast %21 : vector<16x128xf32> to vector<2x8x128xf32>
      %cst_9 = arith.constant dense<0.000000e+00> : vector<8x128xf32>
      %24 = vector.multi_reduction <add>, %23, %cst_9 [0] : vector<2x8x128xf32> to vector<8x128xf32>
      %25 = arith.addf %22, %24 : vector<8x128xf32>
      %c0_10 = arith.constant 0 : index
      %c0_11 = arith.constant 0 : index
      %26 = vector.load %arg5[%c0_10, %c0_11] : memref<8x128xf32, #tpu.memory_space<vmem>>, vector<8x128xf32>
      tpu.vector_store %arg5[%c0_10, %c0_11], %25 {strides = array<i32>} : memref<8x128xf32, #tpu.memory_space<vmem>>, vector<8x128xf32>,
      %c1_i32_12 = arith.constant 1 : i32
    } else {
    }
    %c0_i32_3 = arith.constant 0 : i32
    %8 = arith.cmpi eq, %arg1, %c0_i32_3 : i32
    %9 = arith.extui %8 : i1 to i32
    %c0_i32_4 = arith.constant 0 : i32
    %10 = arith.cmpi ne, %9, %c0_i32_4 : i32
    scf.if %10 {
      %c0 = arith.constant 0 : index
      %c0_5 = arith.constant 0 : index
      %11 = vector.load %arg5[%c0, %c0_5] : memref<8x128xf32, #tpu.memory_space<vmem>>, vector<8x128xf32>
      %12 = vector.shape_cast %11 : vector<8x128xf32> to vector<1x8x128xf32>
      %cst = arith.constant dense<0.000000e+00> : vector<1xf32>
      %13 = vector.multi_reduction <add>, %12, %cst [1, 2] : vector<1x8x128xf32> to vector<1xf32>
      %14 = vector.shape_cast %13 : vector<1xf32> to vector<1x1x1xf32>
      %15 = vector.extract %14[0, 0, 0] : f32 from vector<1x1x1xf32>
      %c0_6 = arith.constant 0 : index
      %c0_7 = arith.constant 0 : index
      %16 = memref.load %arg4[%c0_6, %c0_7] : memref<1x1xf32, #tpu.memory_space<smem>>
      memref.store %15, %arg4[%c0_6, %c0_7] : memref<1x1xf32, #tpu.memory_space<smem>>
    } else {
    }
    return
  }
  func.func @transform_0(%arg0: i32, %arg1: i32) -> (i32, i32) {
    %c0_i32 = arith.constant 0 : i32
    %c0_i32_0 = arith.constant 0 : i32
    return %arg1, %c0_i32 : i32, i32
  }
  func.func @transform_1(%arg0: i32, %arg1: i32) -> (i32, i32) {
    %c0_i32 = arith.constant 0 : i32
    %c0_i32_0 = arith.constant 0 : i32
    return %arg1, %c0_i32 : i32, i32
  }
  func.func @transform_2(%arg0: i32, %arg1: i32) -> (i32, i32) {
    %c0_i32 = arith.constant 0 : i32
    %c0_i32_0 = arith.constant 0 : i32
    return %arg0, %c0_i32 : i32, i32
  }
}

</mosaic_0001>

<llo_original>
// kernel: tpu_custom_call.1
$region0: #{tpu_custom_call.1}
  #allocation0 [shape = 'u32[]', space=smem, size = 0x4, offset = 0x4, fixed_abs, tag = 'smem constant byte address 0x4 - core index']
  #allocation1 [shape = 'u32[72,128]{1,0:T(1,128)}', space=vmem, size = 0x9000, scoped, tag = 'internal scratch']
  #allocation2 [shape = 'f32[8,128]{1,0:T(8,128)}', space=vmem, size = 0x1000, scoped, tag = 'scratch operand']
  %s0 = inlined_call_operand.hbm [shape: f32[16,128], index: 0, kind: input, shape index: {}]
  %s1 = inlined_call_operand.hbm [shape: f32[16,128], index: 1, kind: input, shape index: {}]
  %s2 = inlined_call_operand.hbm [shape: f32[1,1], index: 2, kind: output, shape index: {}]
  %s3 = sld [smem:[#allocation0]]
  $region38: #{tpu_custom_call.1} parent=0
    _
  %s5 = ssub.s32 1, %s3
  %s6 = scalar_select 0, %s5, %s3
  $region1: #{tpu_custom_call.1} parent=0
    #allocation3 [shape = 'u8[8192]{0}', space=vmem, size = 0x2000, scoped, tag = 'input window, operand 0, single buffered']
    #allocation4 [shape = 's32[1]{0}', space=sflag, size = 0x4, scoped, tag = 'scoped memory for tpu_custom_call.1']
    #allocation5 [shape = 's32[1]{0}', space=sflag, size = 0x4, scoped, tag = 'scoped memory for tpu_custom_call.1']
    #allocation6 [shape = 'u8[8192]{0}', space=vmem, size = 0x2000, scoped, tag = 'input window, operand 1, single buffered']
    #allocation7 [shape = 's32[1]{0}', space=sflag, size = 0x4, scoped, tag = 'scoped memory for tpu_custom_call.1']
    #allocation8 [shape = 'u8[512]{0}', space=smem, size = 0x200, scoped, tag = 'output window, operand 0, single buffered']
    %7 = vsyncpa [#allocation4], 0
    %8 = vsyncpa [#allocation7], 0
    %9 = vsyncpa [#allocation5], 0
    // Predicated region
    $region2: #{tpu_custom_call.1} parent=1 // pred_check
      _
    $region3: #{tpu_custom_call.1} parent=1 // pred_check_branch
      %11 = sbr.rel (0) target = $region5
    $region4: #{tpu_custom_call.1} parent=1 // pred_region
      %13 = vsyncadd [#allocation4], 0
      %s14 = sshll.u32 %s0, 4
      %s15 = int_to_ptr.hbm [resolvable:$true] %s14
      %s16 = sshll.u32 [#allocation3], 4
      %s17 = int_to_ptr.vmem [resolvable:$true] %s16
      %22 = dma.hbm_to_vmem [thread:$0]  %s15, 256, %s17, [#allocation4], 128, 128, 8
    $region5: #{tpu_custom_call.1} parent=1 // pred_fallthru
      _
    // Predicated region
    $region6: #{tpu_custom_call.1} parent=1 // pred_check
      _
    $region7: #{tpu_custom_call.1} parent=1 // pred_check_branch
      %24 = sbr.rel (0) target = $region9
    $region8: #{tpu_custom_call.1} parent=1 // pred_region
      %26 = vsyncadd [#allocation7], 0
      %s27 = sshll.u32 %s1, 4
      %s28 = int_to_ptr.hbm [resolvable:$true] %s27
      %s29 = sshll.u32 [#allocation6], 4
      %s30 = int_to_ptr.vmem [resolvable:$true] %s29
      %35 = dma.hbm_to_vmem [thread:$0]  %s28, 256, %s30, [#allocation7], 128, 128, 8
    $region9: #{tpu_custom_call.1} parent=1 // pred_fallthru
      _
    // Predicated region
    $region10: #{tpu_custom_call.1} parent=1 // pred_check
      _
    $region11: #{tpu_custom_call.1} parent=1 // pred_check_branch
      %37 = sbr.rel (0) target = $region13
    $region12: #{tpu_custom_call.1} parent=1 // pred_region
      %39 = dma.done [#allocation4], 256
    $region13: #{tpu_custom_call.1} parent=1 // pred_fallthru
      _
    // Predicated region
    $region14: #{tpu_custom_call.1} parent=1 // pred_check
      _
    $region15: #{tpu_custom_call.1} parent=1 // pred_check_branch
      %41 = sbr.rel (0) target = $region17
    $region16: #{tpu_custom_call.1} parent=1 // pred_region
      %43 = dma.done [#allocation7], 256
    $region17: #{tpu_custom_call.1} parent=1 // pred_fallthru
      _
    %p44 = scmp.eq.s32.totalorder 0, 0
    // Predicated region
    $region18: #{tpu_custom_call.1} parent=1 // pred_check
      %p45 = pneg %p44
    $region19: #{tpu_custom_call.1} parent=1 // pred_check_branch
      %47 = sbr.rel (%p45) target = $region21
    $region20: #{tpu_custom_call.1} parent=1 // pred_region
      %48 = vst [vmem:[#allocation2] sm:$0xff] 0.0
    $region21: #{tpu_custom_call.1} parent=1 // pred_fallthru
      _
    %s49 = sadd.s32 0, 0
    %p50 = scmp.lt.s32.totalorder %s49, 1
    // Predicated region
    $region22: #{tpu_custom_call.1} parent=1 // pred_check
      %p51 = pneg %p50
    $region23: #{tpu_custom_call.1} parent=1 // pred_check_branch
      %53 = sbr.rel (%p51) target = $region25
    $region24: #{tpu_custom_call.1} parent=1 // pred_region
      %v54 = vld [vmem:[#allocation3] sm:$0xff]
      %v55 = vld [vmem:[#allocation3 + $0x8] sm:$0xff]
      %v56 = vld [vmem:[#allocation6] sm:$0xff]
      %v57 = vld [vmem:[#allocation6 + $0x8] sm:$0xff]
      %v58 = vsub.f32 %v54, %v56
      %v59 = vsub.f32 %v55, %v57
      %v60 = vmul.f32 %v58, %v58
      %v61 = vmul.f32 %v59, %v59
      %v62 = vadd.f32 %v60, 1e-12
      %v63 = vadd.f32 %v61, 1e-12
      %v64 = vrsqrt.pop %v62
      %v65 = vmul.f32 %v64, %v62
      %v66 = vmul.f32 %v65, %v64
      %v67 = vmul.f32 0.5, %v66
      %v68 = vsub.f32 1.5, %v67
      %v69 = vmul.f32 %v64, %v68
      %v70 = vmul.f32 %v62, %v69
      %vm71 = vcmp.eq.f32.partialorder %v62, inf
      %v72 = vsel %vm71, %v62, %v70
      %vm73 = vcmp.eq.f32.partialorder %v62, 0.0
      %v74 = vand.u32 %v62, 2147483648
      %v75 = vsel %vm73, %v74, %v72
      %v76 = vrsqrt.pop %v63
      %v77 = vmul.f32 %v76, %v63
      %v78 = vmul.f32 %v77, %v76
      %v79 = vmul.f32 0.5, %v78
      %v80 = vsub.f32 1.5, %v79
      %v81 = vmul.f32 %v76, %v80
      %v82 = vmul.f32 %v63, %v81
      %vm83 = vcmp.eq.f32.partialorder %v63, inf
      %v84 = vsel %vm83, %v63, %v82
      %vm85 = vcmp.eq.f32.partialorder %v63, 0.0
      %v86 = vand.u32 %v63, 2147483648
      %v87 = vsel %vm85, %v86, %v84
      %v88 = vld [vmem:[#allocation2] sm:$0xff]
      %v89 = vadd.f32 %v75, %v87
      %v90 = vadd.f32 %v88, %v89
      %91 = vst [vmem:[#allocation2] sm:$0xff] %v90
    $region25: #{tpu_custom_call.1} parent=1 // pred_fallthru
      _
    // Predicated region
    $region26: #{tpu_custom_call.1} parent=1 // pred_check
      %p92 = pneg %p44
    $region27: #{tpu_custom_call.1} parent=1 // pred_check_branch
      %94 = sbr.rel (%p92) target = $region29
    $region28: #{tpu_custom_call.1} parent=1 // pred_region
      %v95 = vld [vmem:[#allocation2] sm:$0xff]
      %96 = vadd.xlane.f32.xlu0 %v95
      %v97 = vpop.xlane.xlu0 %96
      %v98 = vrot.slane %v97, 4
      %v99 = vadd.f32 %v97, %v98
      %v100 = vrot.slane %v99, 2
      %v101 = vadd.f32 %v99, %v100
      %v102 = vrot.slane %v101, 1
      %v103 = vadd.f32 %v101, %v102
      %s104 = vtos %v103
      %s105 = scalar_lea.smem [#allocation8], 0
      %106 = sst [smem:[%s105]] %s104
    $region29: #{tpu_custom_call.1} parent=1 // pred_fallthru
      _
    // Predicated region
    $region30: #{tpu_custom_call.1} parent=1 // pred_check
      _
    $region31: #{tpu_custom_call.1} parent=1 // pred_check_branch
      %108 = sbr.rel (0) target = $region33
    $region32: #{tpu_custom_call.1} parent=1 // pred_region
      %110 = vsyncadd [#allocation5], 0
      %s112 = sshll.u32 %s2, 4
      %s113 = int_to_ptr.hbm [resolvable:$true] %s112
      %115 = dma.smem_to_hbm [#allocation8], 16, %s113, [#allocation5]
    $region33: #{tpu_custom_call.1} parent=1 // pred_fallthru
      _
    // Predicated region
    $region34: #{tpu_custom_call.1} parent=1 // pred_check
      _
    $region35: #{tpu_custom_call.1} parent=1 // pred_check_branch
      %117 = sbr.rel (0) target = $region37
    $region36: #{tpu_custom_call.1} parent=1 // pred_region
      %119 = dma.done [#allocation5], 16
    $region37: #{tpu_custom_call.1} parent=1 // pred_fallthru
      _
    %120 = sfence
    %121 = vsyncpa [#allocation4], 1
    %122 = vsyncpa [#allocation7], 1
    %123 = vsyncpa [#allocation5], 1

</llo_original>
